<compile_context>
chip_gen: v7x
topology: tpu7x:2x2x1
jax: 0.10.0
libtpu: 0.0.40
codegen_flags: <defaults>
</compile_context>

<pallas_src>
import functools

import jax
import jax.numpy as jnp
from jax import lax
from jax.experimental import pallas as pl
from jax.experimental.pallas import tpu as pltpu


def _loss_stats_kernel(pred_ref, targ_ref, out_ref, *, gamma, tm, kc,
                       n_valid, needs_mask, approx_recip):
    """Accumulate [intersection, pred_sum, target_sum, focal_sum] partials
    into a resident (4, 8, 128) block per (batch, split)."""
    s = pl.program_id(1)   # reduction-split axis (for v7x megacore)
    k = pl.program_id(2)   # reduction (chunk) axis

    @pl.when(k == 0)
    def _():
        out_ref[...] = jnp.zeros_like(out_ref)

    x = pred_ref[...].astype(jnp.float32)   # logits tile  (tm, 128)
    t = targ_ref[...].astype(jnp.float32)   # targets tile (tm, 128)

    if needs_mask:
        # Mask the ragged tail (and any over-read chunk) against the original
        # element count.  Masked logits -> -1e9 and targets -> 0 make every
        # derived quantity contribute exactly zero (and squash any garbage
        # read from the partial last block).
        c = s * kc + k
        rows = lax.broadcasted_iota(jnp.int32, (tm, 128), 0)
        lanes = lax.broadcasted_iota(jnp.int32, (tm, 128), 1)
        gidx = (c * tm + rows) * 128 + lanes
        valid = gidx < n_valid
        x = jnp.where(valid, x, -1e9)
        t = jnp.where(valid, t, 0.0)

    # Stable sigmoid / log-sigmoid sharing one exp (EUP: exp, log1p, recip):
    #   e = exp(-|x|)
    #   sigmoid(x)        = (x>=0 ? 1 : e) * (1/(1+e))
    #   log(sigmoid(x))   = min(x, 0) - log1p(e)
    #   log(1-sigmoid(x)) = log(sigmoid(x)) - x
    neg_abs = -jnp.abs(x)
    e = jnp.exp(neg_abs)
    inv_denom = pl.reciprocal(1.0 + e, approx=approx_recip)
    p = jnp.where(x >= 0.0, 1.0, e) * inv_denom
    logsig = jnp.minimum(x, 0.0) - jnp.log1p(e)

    # torch.nn.functional.binary_cross_entropy clamps each log term at -100.
    log_p = jnp.maximum(logsig, -100.0)
    log_1mp = jnp.maximum(logsig - x, -100.0)
    bce = -(t * log_p + (1.0 - t) * log_1mp)

    pt_prod = p * t                          # reused for the intersection sum
    one_m_pt = p + t - 2.0 * pt_prod         # == 1 - (t*p + (1-t)*(1-p))
    g = float(gamma)
    if g == int(g) and 1 <= int(g) <= 8:
        focal_term = one_m_pt
        for _ in range(int(g) - 1):          # pure VPU multiplies
            focal_term = focal_term * one_m_pt
    elif g == 0.0:
        focal_term = jnp.ones_like(one_m_pt)
    else:
        focal_term = one_m_pt ** g
    focal = focal_term * bce                 # alpha folded into host finalize

    def _acc(i, tile):
        if tm % 8 == 0:
            # Leading-axis reduction -> pure VALU vreg adds; dense (8,128)
            # accumulate/store, no XLU, no masked vst.
            out_ref[i] += tile.reshape(tm // 8, 8, 128).sum(axis=0)
        else:
            # Tiny-R fallback (tm < 8): one masked sub-row store per step.
            out_ref[i, 0:1, :] += jnp.sum(tile, axis=0, keepdims=True)

    _acc(0, pt_prod)   # intersection partial
    _acc(1, p)         # pred-sum partial
    _acc(2, t)         # target-sum partial
    _acc(3, focal)     # focal-sum partial (without alpha)


def _cdiv(a, b):
    return -(-a // b)


def combined_loss(pred, target, *, dice_weight=1.0, focal_weight=1.0,
                  smooth=1.0, alpha=0.25, gamma=2.0, tile_rows=4096,
                  approx_reciprocal=False, split_reduction_for_megacore=True):
    """pred, target: (B, C, H, W); pred holds logits. target may be any dtype
    (bool/int8/float); it is streamed natively and cast to f32 in-kernel."""
    B = pred.shape[0]
    pred2 = pred.reshape(B, -1)
    targ2 = target.reshape(B, -1)
    N = pred2.shape[1]

    # Lane-pad only to the next multiple of 128 (values irrelevant — the tail
    # is masked in-kernel).  No row padding, no extra full HBM copy.
    R = _cdiv(N, 128)
    lane_pad = R * 128 - N
    if lane_pad:
        pred2 = jnp.pad(pred2, ((0, 0), (0, lane_pad)))
        targ2 = jnp.pad(targ2, ((0, 0), (0, lane_pad)))
    pred3 = pred2.reshape(B, R, 128)
    targ3 = targ2.reshape(B, R, 128)

    # Sublane tiling granularity of the narrowest streamed dtype.
    def _gran(dt):
        return {1: 32, 2: 16, 4: 8}.get(jnp.dtype(dt).itemsize, 8)
    gran = max(_gran(pred3.dtype), _gran(targ3.dtype))

    if R <= gran:
        tm = R                                   # full-dim block (allowed)
    else:
        tm = min(int(tile_rows), R)
        tm = max((tm // gran) * gran, gran)      # multiple of gran, <= R
    num_chunks = _cdiv(R, tm)

    # Split the reduction axis for odd/small B so both v7x TensorCores get
    # work; harmless (one extra 16 KiB partial) on single-TC chips.
    S = 2 if (split_reduction_for_megacore and B % 2 == 1
              and num_chunks >= 2) else 1
    kc = _cdiv(num_chunks, S)

    covered = S * kc * tm * 128                  # elements the grid touches
    needs_mask = covered != N

    if S * kc > num_chunks:
        # Clamp over-read chunk indices in-bounds; the kernel masks them out.
        def in_map(b, s, k):
            return (b, jnp.minimum(s * kc + k, num_chunks - 1), 0)
    else:
        def in_map(b, s, k):
            return (b, s * kc + k, 0)

    kernel = functools.partial(
        _loss_stats_kernel, gamma=float(gamma), tm=tm, kc=kc, n_valid=N,
        needs_mask=needs_mask, approx_recip=bool(approx_reciprocal))

    # Double-buffered input tiles + slack; covers v5e's 16 MiB scoped default.
    in_buf_bytes = 2 * tm * 128 * (jnp.dtype(pred3.dtype).itemsize
                                   + jnp.dtype(targ3.dtype).itemsize)
    vmem_limit = min(max(int(in_buf_bytes * 1.5) + (4 << 20), 16 << 20),
                     64 << 20)

    lane_stats = pl.pallas_call(
        kernel,
        out_shape=jax.ShapeDtypeStruct((B, S, 4, 8, 128), jnp.float32),
        grid_spec=pltpu.PrefetchScalarGridSpec(
            num_scalar_prefetch=0,
            grid=(B, S, kc),
            in_specs=[
                pl.BlockSpec((None, tm, 128), in_map),
                pl.BlockSpec((None, tm, 128), in_map),
            ],
            out_specs=pl.BlockSpec((None, None, 4, 8, 128),
                                   lambda b, s, k: (b, s, 0, 0, 0)),
        ),
        compiler_params=pltpu.CompilerParams(
            dimension_semantics=("parallel", "parallel", "arbitrary"),
            vmem_limit_bytes=vmem_limit),
    )(pred3, targ3)

    # Tiny host-side finalize: cross-lane/sublane/split reduction + formulas.
    stats = jnp.sum(lane_stats, axis=(1, 3, 4))          # (B, 4)
    inter, psum, tsum, fsum = (stats[:, 0], stats[:, 1],
                               stats[:, 2], stats[:, 3])

    dice = (2.0 * inter + smooth) / (psum + tsum + smooth)
    dice_loss = 1.0 - jnp.mean(dice)
    focal_loss = float(alpha) * jnp.sum(fsum) / (B * N)  # mean over B*N elems
    return dice_weight * dice_loss + focal_weight * focal_loss


def _reference_combined_loss(pred, target, *, dice_weight=1.0, focal_weight=1.0,
                             smooth=1.0, alpha=0.25, gamma=2.0):
    B = pred.shape[0]
    p = jax.nn.sigmoid(pred.reshape(B, -1).astype(jnp.float32))
    t = target.reshape(B, -1).astype(jnp.float32)
    inter = jnp.sum(p * t, axis=1)
    union = jnp.sum(p, axis=1) + jnp.sum(t, axis=1)
    dice = (2.0 * inter + smooth) / (union + smooth)
    dice_loss = 1.0 - jnp.mean(dice)
    bce = -(t * jnp.clip(jnp.log(p), -100.0, None)
            + (1.0 - t) * jnp.clip(jnp.log(1.0 - p), -100.0, None))
    pt = t * p + (1.0 - t) * (1.0 - p)
    focal = alpha * (1.0 - pt) ** gamma * bce
    focal_loss = jnp.mean(focal)
    return dice_weight * dice_loss + focal_weight * focal_loss


if __name__ == "__main__":
    key = jax.random.PRNGKey(0)
    k1, k2 = jax.random.split(key)

    B, C, H, W = 2, 4, 16, 16
    pred = jax.random.normal(k1, (B, C, H, W), dtype=jnp.float32)          # logits
    target = (jax.random.uniform(k2, (B, C, H, W)) > 0.5).astype(jnp.float32)

    out = combined_loss(pred, target)
    out = jax.block_until_ready(out)

    ref = _reference_combined_loss(pred, target)
    assert jnp.allclose(out, ref, rtol=1e-5, atol=1e-5), (out, ref)

    print("KERNEL_OK")
</pallas_src>

<mosaic_0001>
module attributes {stable_mosaic.version = 11 : i64} {
  func.func @_loss_stats_kernel(%arg0: i32, %arg1: i32, %arg2: i32, %arg3: memref<1x8x128xf32, #tpu.memory_space<vmem>>, %arg4: memref<1x8x128xf32, #tpu.memory_space<vmem>>, %arg5: memref<1x1x4x8x128xf32, #tpu.memory_space<vmem>>) attributes {dimension_semantics = [#tpu.dimension_semantics<parallel>, #tpu.dimension_semantics<parallel>, #tpu.dimension_semantics<arbitrary>], iteration_bounds = array<i64: 2, 1, 1>, scalar_prefetch = 0 : i64, scratch_operands = 0 : i64, tpu.core_type = #tpu.core_type<tc>, window_params = [{transform_indices = @transform_0, window_bounds = array<i64: 1, 8, 128>}, {transform_indices = @transform_1, window_bounds = array<i64: 1, 8, 128>}, {transform_indices = @transform_2, window_bounds = array<i64: 1, 1, 4, 8, 128>}]} {
    %c0_i32 = arith.constant 0 : i32
    %0 = arith.cmpi eq, %arg2, %c0_i32 : i32
    %1 = arith.extui %0 : i1 to i32
    %c0_i32_0 = arith.constant 0 : i32
    %2 = arith.cmpi ne, %1, %c0_i32_0 : i32
    scf.if %2 {
      %cst_56 = arith.constant 0.000000e+00 : f32
      %74 = vector.broadcast %cst_56 : f32 to vector<4x8x128xf32>
      %c0_57 = arith.constant 0 : index
      %c0_58 = arith.constant 0 : index
      %c0_59 = arith.constant 0 : index
      %c0_60 = arith.constant 0 : index
      %c0_61 = arith.constant 0 : index
      %75 = vector.load %arg5[%c0_57, %c0_58, %c0_59, %c0_60, %c0_61] : memref<1x1x4x8x128xf32, #tpu.memory_space<vmem>>, vector<1x1x4x8x128xf32>
      %76 = vector.shape_cast %75 : vector<1x1x4x8x128xf32> to vector<4x8x128xf32>
      %77 = vector.shape_cast %74 : vector<4x8x128xf32> to vector<1x1x4x8x128xf32>
      tpu.vector_store %arg5[%c0_57, %c0_58, %c0_59, %c0_60, %c0_61], %77 {strides = array<i32>} : memref<1x1x4x8x128xf32, #tpu.memory_space<vmem>>, vector<1x1x4x8x128xf32>,
    } else {
    }
    %c0 = arith.constant 0 : index
    %c0_1 = arith.constant 0 : index
    %c0_2 = arith.constant 0 : index
    %3 = vector.load %arg3[%c0, %c0_1, %c0_2] : memref<1x8x128xf32, #tpu.memory_space<vmem>>, vector<1x8x128xf32>
    %4 = vector.shape_cast %3 : vector<1x8x128xf32> to vector<8x128xf32>
    %c0_3 = arith.constant 0 : index
    %c0_4 = arith.constant 0 : index
    %c0_5 = arith.constant 0 : index
    %5 = vector.load %arg4[%c0_3, %c0_4, %c0_5] : memref<1x8x128xf32, #tpu.memory_space<vmem>>, vector<1x8x128xf32>
    %6 = vector.shape_cast %5 : vector<1x8x128xf32> to vector<8x128xf32>
    %7 = math.absf %4 : vector<8x128xf32>
    %cst = arith.constant 0.000000e+00 : f32
    %8 = vector.broadcast %cst : f32 to vector<8x128xf32>
    %9 = arith.subf %8, %7 : vector<8x128xf32>
    %10 = math.exp %9 : vector<8x128xf32>
    %cst_6 = arith.constant 1.000000e+00 : f32
    %11 = vector.broadcast %cst_6 : f32 to vector<8x128xf32>
    %12 = arith.addf %11, %10 : vector<8x128xf32>
    %13 = tpu.reciprocal %12 : vector<8x128xf32> -> vector<8x128xf32>
    %cst_7 = arith.constant 0.000000e+00 : f32
    %14 = vector.broadcast %cst_7 : f32 to vector<8x128xf32>
    %15 = arith.cmpf oge, %4, %14 : vector<8x128xf32>
    %cst_8 = arith.constant 1.000000e+00 : f32
    %16 = vector.broadcast %cst_8 : f32 to vector<8x128xf32>
    %17 = arith.select %15, %16, %10 : vector<8x128xi1>, vector<8x128xf32>
    %18 = arith.mulf %17, %13 : vector<8x128xf32>
    %cst_9 = arith.constant 0.000000e+00 : f32
    %19 = vector.broadcast %cst_9 : f32 to vector<8x128xf32>
    %20 = arith.minimumf %4, %19 : vector<8x128xf32>
    %21 = math.log1p %10 : vector<8x128xf32>
    %22 = arith.subf %20, %21 : vector<8x128xf32>
    %cst_10 = arith.constant -1.000000e+02 : f32
    %23 = vector.broadcast %cst_10 : f32 to vector<8x128xf32>
    %24 = arith.maximumf %22, %23 : vector<8x128xf32>
    %25 = arith.subf %22, %4 : vector<8x128xf32>
    %cst_11 = arith.constant -1.000000e+02 : f32
    %26 = vector.broadcast %cst_11 : f32 to vector<8x128xf32>
    %27 = arith.maximumf %25, %26 : vector<8x128xf32>
    %28 = arith.mulf %6, %24 : vector<8x128xf32>
    %cst_12 = arith.constant 1.000000e+00 : f32
    %29 = vector.broadcast %cst_12 : f32 to vector<8x128xf32>
    %30 = arith.subf %29, %6 : vector<8x128xf32>
    %31 = arith.mulf %30, %27 : vector<8x128xf32>
    %32 = arith.addf %28, %31 : vector<8x128xf32>
    %cst_13 = arith.constant 0.000000e+00 : f32
    %33 = vector.broadcast %cst_13 : f32 to vector<8x128xf32>
    %34 = arith.subf %33, %32 : vector<8x128xf32>
    %35 = arith.mulf %18, %6 : vector<8x128xf32>
    %36 = arith.addf %18, %6 : vector<8x128xf32>
    %cst_14 = arith.constant 2.000000e+00 : f32
    %37 = vector.broadcast %cst_14 : f32 to vector<8x128xf32>
    %38 = arith.mulf %37, %35 : vector<8x128xf32>
    %39 = arith.subf %36, %38 : vector<8x128xf32>
    %40 = arith.mulf %39, %39 : vector<8x128xf32>
    %41 = arith.mulf %40, %34 : vector<8x128xf32>
    %c0_15 = arith.constant 0 : index
    %c0_16 = arith.constant 0 : index
    %c0_17 = arith.constant 0 : index
    %c0_18 = arith.constant 0 : index
    %c0_19 = arith.constant 0 : index
    %42 = vector.load %arg5[%c0_15, %c0_16, %c0_17, %c0_18, %c0_19] : memref<1x1x4x8x128xf32, #tpu.memory_space<vmem>>, vector<1x1x1x8x128xf32>
    %43 = vector.shape_cast %42 : vector<1x1x1x8x128xf32> to vector<8x128xf32>
    %44 = vector.shape_cast %35 : vector<8x128xf32> to vector<1x8x128xf32>
    %cst_20 = arith.constant dense<0.000000e+00> : vector<8x128xf32>
    %45 = vector.multi_reduction <add>, %44, %cst_20 [0] : vector<1x8x128xf32> to vector<8x128xf32>
    %46 = arith.addf %43, %45 : vector<8x128xf32>
    %c0_21 = arith.constant 0 : index
    %c0_22 = arith.constant 0 : index
    %c0_23 = arith.constant 0 : index
    %c0_24 = arith.constant 0 : index
    %c0_25 = arith.constant 0 : index
    %47 = vector.load %arg5[%c0_21, %c0_22, %c0_23, %c0_24, %c0_25] : memref<1x1x4x8x128xf32, #tpu.memory_space<vmem>>, vector<1x1x1x8x128xf32>
    %48 = vector.shape_cast %47 : vector<1x1x1x8x128xf32> to vector<8x128xf32>
    %49 = vector.shape_cast %46 : vector<8x128xf32> to vector<1x1x1x8x128xf32>
    tpu.vector_store %arg5[%c0_21, %c0_22, %c0_23, %c0_24, %c0_25], %49 {strides = array<i32>} : memref<1x1x4x8x128xf32, #tpu.memory_space<vmem>>, vector<1x1x1x8x128xf32>,
    %c0_26 = arith.constant 0 : index
    %c0_27 = arith.constant 0 : index
    %c1 = arith.constant 1 : index
    %c0_28 = arith.constant 0 : index
    %c0_29 = arith.constant 0 : index
    %50 = vector.load %arg5[%c0_26, %c0_27, %c1, %c0_28, %c0_29] : memref<1x1x4x8x128xf32, #tpu.memory_space<vmem>>, vector<1x1x1x8x128xf32>
    %51 = vector.shape_cast %50 : vector<1x1x1x8x128xf32> to vector<8x128xf32>
    %52 = vector.shape_cast %18 : vector<8x128xf32> to vector<1x8x128xf32>
    %cst_30 = arith.constant dense<0.000000e+00> : vector<8x128xf32>
    %53 = vector.multi_reduction <add>, %52, %cst_30 [0] : vector<1x8x128xf32> to vector<8x128xf32>
    %54 = arith.addf %51, %53 : vector<8x128xf32>
    %c0_31 = arith.constant 0 : index
    %c0_32 = arith.constant 0 : index
    %c1_33 = arith.constant 1 : index
    %c0_34 = arith.constant 0 : index
    %c0_35 = arith.constant 0 : index
    %55 = vector.load %arg5[%c0_31, %c0_32, %c1_33, %c0_34, %c0_35] : memref<1x1x4x8x128xf32, #tpu.memory_space<vmem>>, vector<1x1x1x8x128xf32>
    %56 = vector.shape_cast %55 : vector<1x1x1x8x128xf32> to vector<8x128xf32>
    %57 = vector.shape_cast %54 : vector<8x128xf32> to vector<1x1x1x8x128xf32>
    tpu.vector_store %arg5[%c0_31, %c0_32, %c1_33, %c0_34, %c0_35], %57 {strides = array<i32>} : memref<1x1x4x8x128xf32, #tpu.memory_space<vmem>>, vector<1x1x1x8x128xf32>,
    %c0_36 = arith.constant 0 : index
    %c0_37 = arith.constant 0 : index
    %c2 = arith.constant 2 : index
    %c0_38 = arith.constant 0 : index
    %c0_39 = arith.constant 0 : index
    %58 = vector.load %arg5[%c0_36, %c0_37, %c2, %c0_38, %c0_39] : memref<1x1x4x8x128xf32, #tpu.memory_space<vmem>>, vector<1x1x1x8x128xf32>
    %59 = vector.shape_cast %58 : vector<1x1x1x8x128xf32> to vector<8x128xf32>
    %60 = vector.shape_cast %6 : vector<8x128xf32> to vector<1x8x128xf32>
    %cst_40 = arith.constant dense<0.000000e+00> : vector<8x128xf32>
    %61 = vector.multi_reduction <add>, %60, %cst_40 [0] : vector<1x8x128xf32> to vector<8x128xf32>
    %62 = arith.addf %59, %61 : vector<8x128xf32>
    %c0_41 = arith.constant 0 : index
    %c0_42 = arith.constant 0 : index
    %c2_43 = arith.constant 2 : index
    %c0_44 = arith.constant 0 : index
    %c0_45 = arith.constant 0 : index
    %63 = vector.load %arg5[%c0_41, %c0_42, %c2_43, %c0_44, %c0_45] : memref<1x1x4x8x128xf32, #tpu.memory_space<vmem>>, vector<1x1x1x8x128xf32>
    %64 = vector.shape_cast %63 : vector<1x1x1x8x128xf32> to vector<8x128xf32>
    %65 = vector.shape_cast %62 : vector<8x128xf32> to vector<1x1x1x8x128xf32>
    tpu.vector_store %arg5[%c0_41, %c0_42, %c2_43, %c0_44, %c0_45], %65 {strides = array<i32>} : memref<1x1x4x8x128xf32, #tpu.memory_space<vmem>>, vector<1x1x1x8x128xf32>,
    %c0_46 = arith.constant 0 : index
    %c0_47 = arith.constant 0 : index
    %c3 = arith.constant 3 : index
    %c0_48 = arith.constant 0 : index
    %c0_49 = arith.constant 0 : index
    %66 = vector.load %arg5[%c0_46, %c0_47, %c3, %c0_48, %c0_49] : memref<1x1x4x8x128xf32, #tpu.memory_space<vmem>>, vector<1x1x1x8x128xf32>
    %67 = vector.shape_cast %66 : vector<1x1x1x8x128xf32> to vector<8x128xf32>
    %68 = vector.shape_cast %41 : vector<8x128xf32> to vector<1x8x128xf32>
    %cst_50 = arith.constant dense<0.000000e+00> : vector<8x128xf32>
    %69 = vector.multi_reduction <add>, %68, %cst_50 [0] : vector<1x8x128xf32> to vector<8x128xf32>
    %70 = arith.addf %67, %69 : vector<8x128xf32>
    %c0_51 = arith.constant 0 : index
    %c0_52 = arith.constant 0 : index
    %c3_53 = arith.constant 3 : index
    %c0_54 = arith.constant 0 : index
    %c0_55 = arith.constant 0 : index
    %71 = vector.load %arg5[%c0_51, %c0_52, %c3_53, %c0_54, %c0_55] : memref<1x1x4x8x128xf32, #tpu.memory_space<vmem>>, vector<1x1x1x8x128xf32>
    %72 = vector.shape_cast %71 : vector<1x1x1x8x128xf32> to vector<8x128xf32>
    %73 = vector.shape_cast %70 : vector<8x128xf32> to vector<1x1x1x8x128xf32>
    tpu.vector_store %arg5[%c0_51, %c0_52, %c3_53, %c0_54, %c0_55], %73 {strides = array<i32>} : memref<1x1x4x8x128xf32, #tpu.memory_space<vmem>>, vector<1x1x1x8x128xf32>,
    return
  }
  func.func @transform_0(%arg0: i32, %arg1: i32, %arg2: i32) -> (i32, i32, i32) {
    %c1_i32 = arith.constant 1 : i32
    %0 = arith.muli %arg1, %c1_i32 : i32
    %1 = arith.addi %0, %arg2 : i32
    %c0_i32 = arith.constant 0 : i32
    %c0_i32_0 = arith.constant 0 : i32
    return %arg0, %1, %c0_i32 : i32, i32, i32
  }
  func.func @transform_1(%arg0: i32, %arg1: i32, %arg2: i32) -> (i32, i32, i32) {
    %c1_i32 = arith.constant 1 : i32
    %0 = arith.muli %arg1, %c1_i32 : i32
    %1 = arith.addi %0, %arg2 : i32
    %c0_i32 = arith.constant 0 : i32
    %c0_i32_0 = arith.constant 0 : i32
    return %arg0, %1, %c0_i32 : i32, i32, i32
  }
  func.func @transform_2(%arg0: i32, %arg1: i32, %arg2: i32) -> (i32, i32, i32, i32, i32) {
    %c0_i32 = arith.constant 0 : i32
    %c0_i32_0 = arith.constant 0 : i32
    %c0_i32_1 = arith.constant 0 : i32
    %c0_i32_2 = arith.constant 0 : i32
    return %arg0, %arg1, %c0_i32, %c0_i32_0, %c0_i32_1 : i32, i32, i32, i32, i32
  }
}

</mosaic_0001>

<llo_original>
// kernel: tpu_custom_call.1
$region0: #{tpu_custom_call.1}
  #allocation0 [shape = 'u32[]', space=smem, size = 0x4, offset = 0x4, fixed_abs, tag = 'smem constant byte address 0x4 - core index']
  #allocation1 [shape = 'u32[144,128]{1,0:T(1,128)}', space=vmem, size = 0x12000, scoped, tag = 'internal scratch']
  %s0 = inlined_call_operand.hbm [shape: f32[2,8,128], index: 0, kind: input, shape index: {}]
  %s1 = inlined_call_operand.hbm [shape: f32[2,8,128], index: 1, kind: input, shape index: {}]
  %s2 = inlined_call_operand.hbm [shape: f32[2,1,4,8,128], index: 2, kind: output, shape index: {}]
  %s3 = sld [smem:[#allocation0]]
  $region53: #{tpu_custom_call.1} parent=0
    _
  %s5 = ssub.s32 1, %s3
  %s6 = scalar_select 0, %s5, %s3
  $region1: #{tpu_custom_call.1} parent=0
    #allocation2 [shape = 'u8[8192]{0}', space=vmem, size = 0x2000, scoped, tag = 'input window, operand 0']
    #allocation3 [shape = 's32[2]{0}', space=sflag, size = 0x8, scoped, tag = 'scoped memory for tpu_custom_call.1']
    #allocation4 [shape = 's32[2]{0}', space=sflag, size = 0x8, scoped, tag = 'scoped memory for tpu_custom_call.1']
    #allocation5 [shape = 'u8[8192]{0}', space=vmem, size = 0x2000, scoped, tag = 'input window, operand 1']
    #allocation6 [shape = 's32[2]{0}', space=sflag, size = 0x8, scoped, tag = 'scoped memory for tpu_custom_call.1']
    #allocation7 [shape = 'u8[32768]{0}', space=vmem, size = 0x8000, scoped, tag = 'output window, operand 0']
    %7 = vsyncpa [#allocation3], 0
    %s8 = scalar_lea.sflag [#allocation3], 1
    %9 = vsyncpa %s8, 0
    %10 = vsyncpa [#allocation6], 0
    %s11 = scalar_lea.sflag [#allocation6], 1
    %12 = vsyncpa %s11, 0
    %13 = vsyncpa [#allocation4], 0
    %s14 = scalar_lea.sflag [#allocation4], 1
    %15 = vsyncpa %s14, 0
    loop: start=0, step=1, limit=4
    $region2: #{tpu_custom_call.1} parent=1 // loop_pre_header
      _
    $region3: #{tpu_custom_call.1} parent=1 // loop_header
      %s17 = sphi 0, %s21
      %p18 = scmp.ge.s32.totalorder %s17, 4
      %s24 = sphi 0, %s43
      %s25 = sphi 0, %s39
      %s26 = sphi 0, %s35
      %s27 = sphi 0, %s24
      %s28 = sphi 0, %s25
      %s29 = sphi 0, %s26
      %s30 = sphi 0, %s27
      %s31 = sphi 0, %s28
      %s32 = sphi 0, %s29
      %s50 = sphi 0, %s52
      %s53 = sphi 0, %s50
      %s54 = sphi 0, %s53
      %s70 = sphi 0, %s54
      %s80 = sphi 0, %s82
      %s83 = sphi 0, %s80
      %s84 = sphi 0, %s83
      %s100 = sphi 0, %s84
      %s108 = sphi 0, %s110
      %s111 = sphi 0, %s108
      %s112 = sphi 0, %s111
      %s128 = sphi 0, %s112
    $region4: #{tpu_custom_call.1} parent=1 // loop_header_branch
      %20 = sbr.rel (%p18) target = $region8
    $region5: #{tpu_custom_call.1} parent=1 // loop_body
      %s22 = ssub.s32 %s17, 1
      %s23 = ssub.s32 %s17, 2
      %s33 = sadd.s32 1, %s26
      %p34 = scmp.ge.s32.totalorder %s33, 1
      %s35 = scalar_select %p34, 0, %s33
      %s36 = sadd.s32 1, %s25
      %s37 = scalar_select %p34, %s36, %s25
      %p38 = scmp.ge.s32.totalorder %s37, 1
      %s39 = scalar_select %p38, 0, %s37
      %s40 = sadd.s32 1, %s24
      %s41 = scalar_select %p38, %s40, %s24
      %p42 = scmp.ge.s32.totalorder %s41, 2
      %s43 = scalar_select %p42, 0, %s41
      %s44 = sadd.s32 %s25, %s26
      %s45 = sadd.s32 %s39, %s35
      %s46 = ssub.s32 %s24, %s43
      %s47 = ssub.s32 %s44, %s45
      %s48 = sor.u32 %s46, %s47
      %p49 = scmp.eq.s32.totalorder %s48, 0
      %s51 = sadd.s32 %s50, 1
      %s52 = scalar_select %p49, %s50, %s51
      %p55 = pneg %p49
      %p56 = scmp.eq.s32.totalorder %s17, 1
      %p57 = por %p55, %p56
      %p58 = scmp.ne.s32.totalorder %s50, %s53
      %p59 = scmp.eq.s32.totalorder %s17, 0
      %p60 = por %p58, %p59
      %p61 = scmp.ne.s32.totalorder %s50, %s53
      %p62 = scmp.eq.s32.totalorder %s22, 1
      %p63 = por %p61, %p62
      %p64 = scmp.ne.s32.totalorder %s53, %s54
      %p65 = scmp.eq.s32.totalorder %s22, 0
      %p66 = por %p64, %p65
      %p67 = scmp.ne.s32.totalorder %s53, %s54
      %p68 = scmp.eq.s32.totalorder %s23, 1
      %p69 = por %p67, %p68
      %p71 = scmp.ne.s32.totalorder %s54, %s70
      %p72 = scmp.eq.s32.totalorder %s23, 0
      %p73 = por %p71, %p72
      %s74 = sadd.s32 %s25, %s26
      %s75 = sadd.s32 %s39, %s35
      %s76 = ssub.s32 %s24, %s43
      %s77 = ssub.s32 %s74, %s75
      %s78 = sor.u32 %s76, %s77
      %p79 = scmp.eq.s32.totalorder %s78, 0
      %s81 = sadd.s32 %s80, 1
      %s82 = scalar_select %p79, %s80, %s81
      %p85 = pneg %p79
      %p86 = scmp.eq.s32.totalorder %s17, 1
      %p87 = por %p85, %p86
      %p88 = scmp.ne.s32.totalorder %s80, %s83
      %p89 = scmp.eq.s32.totalorder %s17, 0
      %p90 = por %p88, %p89
      %p91 = scmp.ne.s32.totalorder %s80, %s83
      %p92 = scmp.eq.s32.totalorder %s22, 1
      %p93 = por %p91, %p92
      %p94 = scmp.ne.s32.totalorder %s83, %s84
      %p95 = scmp.eq.s32.totalorder %s22, 0
      %p96 = por %p94, %p95
      %p97 = scmp.ne.s32.totalorder %s83, %s84
      %p98 = scmp.eq.s32.totalorder %s23, 1
      %p99 = por %p97, %p98
      %p101 = scmp.ne.s32.totalorder %s84, %s100
      %p102 = scmp.eq.s32.totalorder %s23, 0
      %p103 = por %p101, %p102
      %s104 = ssub.s32 %s24, %s43
      %s105 = ssub.s32 %s25, %s39
      %s106 = sor.u32 %s104, %s105
      %p107 = scmp.eq.s32.totalorder %s106, 0
      %s109 = sadd.s32 %s108, 1
      %s110 = scalar_select %p107, %s108, %s109
      %p113 = pneg %p107
      %p114 = scmp.eq.s32.totalorder %s17, 1
      %p115 = por %p113, %p114
      %p116 = scmp.ne.s32.totalorder %s108, %s111
      %p117 = scmp.eq.s32.totalorder %s17, 0
      %p118 = por %p116, %p117
      %p119 = scmp.ne.s32.totalorder %s108, %s111
      %p120 = scmp.eq.s32.totalorder %s22, 1
      %p121 = por %p119, %p120
      %p122 = scmp.ne.s32.totalorder %s111, %s112
      %p123 = scmp.eq.s32.totalorder %s22, 0
      %p124 = por %p122, %p123
      %p125 = scmp.ne.s32.totalorder %s111, %s112
      %p126 = scmp.eq.s32.totalorder %s23, 1
      %p127 = por %p125, %p126
      %p129 = scmp.ne.s32.totalorder %s112, %s128
      %p130 = scmp.eq.s32.totalorder %s23, 0
      %p131 = por %p129, %p130
      %p132 = scmp.le.s32.totalorder 1, %s17
      %p133 = scmp.lt.s32.totalorder %s17, 3
      %p134 = pnand %p132, %p133
      %p135 = pneg %p134
      // Predicated region
      $region9: #{tpu_custom_call.1} parent=5 // pred_check
        _
      $region10: #{tpu_custom_call.1} parent=5 // pred_check_branch
        %137 = sbr.rel (%p134) target = $region12
      $region11: #{tpu_custom_call.1} parent=5 // pred_region
        %s138 = ssub.s32 %s17, 1
      $region12: #{tpu_custom_call.1} parent=5 // pred_fallthru
        _
      %p139 = scmp.lt.s32.totalorder %s17, 2
      // Predicated region
      $region13: #{tpu_custom_call.1} parent=5 // pred_check
        %p140 = pneg %p139
      $region14: #{tpu_custom_call.1} parent=5 // pred_check_branch
        %142 = sbr.rel (%p140) target = $region16
      $region15: #{tpu_custom_call.1} parent=5 // pred_region
        // Predicated region
        $region17: #{tpu_custom_call.1} parent=15 // pred_check
          %p143 = pneg %p60
        $region18: #{tpu_custom_call.1} parent=15 // pred_check_branch
          %145 = sbr.rel (%p143) target = $region20
        $region19: #{tpu_custom_call.1} parent=15 // pred_region
          %s146 = sand.u32 %s50, 1
          %s147 = scalar_lea.sflag [#allocation3], %s146
          %s148 = sand.u32 %s50, 1
          %s149 = smul.addr %s148, 8
          %s150 = scalar_lea.vmem [#allocation2], %s149
          %s151 = sadd.s32 %s25, %s26
          %s153 = ssub.s32 128, 128
          %154 = vsyncadd %s147, %s153
          %s155 = sadd.s32 %s151, %s24
          %s156 = smul.addr %s155, 128
          %s157 = scalar_lea.hbm %s0, %s156
          %s159 = sshll.u32 %s150, 4
          %s160 = int_to_ptr.vmem [resolvable:$true] %s159
          %162 = dma.hbm_to_vmem [thread:$0]  %s157, 128, %s160, %s147
        $region20: #{tpu_custom_call.1} parent=15 // pred_fallthru
          _
        // Predicated region
        $region21: #{tpu_custom_call.1} parent=15 // pred_check
          %p163 = pneg %p90
        $region22: #{tpu_custom_call.1} parent=15 // pred_check_branch
          %165 = sbr.rel (%p163) target = $region24
        $region23: #{tpu_custom_call.1} parent=15 // pred_region
          %s166 = sand.u32 %s80, 1
          %s167 = scalar_lea.sflag [#allocation6], %s166
          %s168 = sand.u32 %s80, 1
          %s169 = smul.addr %s168, 8
          %s170 = scalar_lea.vmem [#allocation5], %s169
          %s171 = sadd.s32 %s25, %s26
          %s173 = ssub.s32 128, 128
          %174 = vsyncadd %s167, %s173
          %s175 = sadd.s32 %s171, %s24
          %s176 = smul.addr %s175, 128
          %s177 = scalar_lea.hbm %s1, %s176
          %s179 = sshll.u32 %s170, 4
          %s180 = int_to_ptr.vmem [resolvable:$true] %s179
          %182 = dma.hbm_to_vmem [thread:$0]  %s177, 128, %s180, %s167
        $region24: #{tpu_custom_call.1} parent=15 // pred_fallthru
          _
      $region16: #{tpu_custom_call.1} parent=5 // pred_fallthru
        _
      %p183 = scmp.le.s32.totalorder 1, %s17
      %p184 = scmp.lt.s32.totalorder %s17, 3
      %p185 = pnand %p183, %p184
      %p186 = pneg %p185
      // Predicated region
      $region25: #{tpu_custom_call.1} parent=5 // pred_check
        _
      $region26: #{tpu_custom_call.1} parent=5 // pred_check_branch
        %188 = sbr.rel (%p185) target = $region28
      $region27: #{tpu_custom_call.1} parent=5 // pred_region
        %s189 = ssub.s32 %s17, 1
        %s190 = sand.u32 %s53, 1
        %s191 = scalar_lea.sflag [#allocation3], %s190
        %s192 = sand.u32 %s53, 1
        %s193 = smul.addr %s192, 8
        %s194 = scalar_lea.vmem [#allocation2], %s193
        // Predicated region
        $region29: #{tpu_custom_call.1} parent=27 // pred_check
          %p195 = pneg %p66
        $region30: #{tpu_custom_call.1} parent=27 // pred_check_branch
          %197 = sbr.rel (%p195) target = $region32
        $region31: #{tpu_custom_call.1} parent=27 // pred_region
          %198 = dma.done %s191, 128
        $region32: #{tpu_custom_call.1} parent=27 // pred_fallthru
          _
        %s199 = sand.u32 %s83, 1
        %s200 = scalar_lea.sflag [#allocation6], %s199
        %s201 = sand.u32 %s83, 1
        %s202 = smul.addr %s201, 8
        %s203 = scalar_lea.vmem [#allocation5], %s202
        // Predicated region
        $region33: #{tpu_custom_call.1} parent=27 // pred_check
          %p204 = pneg %p96
        $region34: #{tpu_custom_call.1} parent=27 // pred_check_branch
          %206 = sbr.rel (%p204) target = $region36
        $region35: #{tpu_custom_call.1} parent=27 // pred_region
          %207 = dma.done %s200, 128
        $region36: #{tpu_custom_call.1} parent=27 // pred_fallthru
          _
        %s208 = sand.u32 %s53, 1
        %s209 = scalar_lea.sflag [#allocation3], %s208
        %s210 = sand.u32 %s53, 1
        %s211 = smul.addr %s210, 8
        %s212 = scalar_lea.vmem [#allocation2], %s211
        %p213 = pneg %p66
        %p214 = pneg %p63
        %s215 = sand.u32 %s83, 1
        %s216 = scalar_lea.sflag [#allocation6], %s215
        %s217 = sand.u32 %s83, 1
        %s218 = smul.addr %s217, 8
        %s219 = scalar_lea.vmem [#allocation5], %s218
        %p220 = pneg %p96
        %p221 = pneg %p93
        %p222 = pneg %p124
        %p223 = pneg %p121
        %s224 = sand.u32 %s111, 1
        %s225 = scalar_lea.sflag [#allocation4], %s224
        %s226 = sand.u32 %s111, 1
        %s227 = smul.addr %s226, 32
        %s228 = scalar_lea.vmem [#allocation7], %s227
        %s229 = sadd.s32 %s28, %s29
        %s230 = sadd.s32 %s28, %s29
        %p231 = scmp.eq.s32.totalorder %s29, 0
        // Predicated region
        $region37: #{tpu_custom_call.1} parent=27 // pred_check
          %p232 = pneg %p231
        $region38: #{tpu_custom_call.1} parent=27 // pred_check_branch
          %234 = sbr.rel (%p232) target = $region40
        $region39: #{tpu_custom_call.1} parent=27 // pred_region
          %235 = vst [vmem:[%s228] sm:$0xff] 0.0
          %236 = vst [vmem:[%s228 + $0x8] sm:$0xff] 0.0
          %237 = vst [vmem:[%s228 + $0x10] sm:$0xff] 0.0
          %238 = vst [vmem:[%s228 + $0x18] sm:$0xff] 0.0
        $region40: #{tpu_custom_call.1} parent=27 // pred_fallthru
          _
        %v239 = vld [vmem:[%s194] sm:$0xff]
        %v240 = vld [vmem:[%s203] sm:$0xff]
        %v241 = vand.u32 2147483647, %v239
        %v242 = vsub.f32 0.0, %v241
        %v243 = vmul.f32 %v242, 1.442695
        %v244 = vpow.pop %v243
        %v245 = vadd.f32 %v244, 1.0
        %v246 = vrcp.pop %v245
        %vm247 = vcmp.ge.f32.partialorder %v239, 0.0
        %v248 = vsel %vm247, 1.0, %v244
        %v249 = vmul.f32 %v248, %v246
        %v250 = vmin.f32 %v239, 0.0
        %v251 = vadd.f32 %v244, 1.0
        %v252 = vlog2.pop %v251
        %v253 = vmul.f32 %v252, 0.6931472
        %v254 = vmul.f32 -0.5, %v244
        %v255 = vadd.f32 %v254, 1.0
        %v256 = vmul.f32 %v255, %v244
        %v257 = vand.u32 2147483647, %v244
        %vm258 = vcmp.lt.f32.partialorder %v257, 0.0004427343
        %v259 = vsel %vm258, %v256, %v253
        %v260 = vsub.f32 %v250, %v259
        %v261 = vmax.f32 %v260, -100.0
        %v262 = vsub.f32 %v260, %v239
        %v263 = vmax.f32 %v262, -100.0
        %v264 = vmul.f32 %v240, %v261
        %v265 = vsub.f32 1.0, %v240
        %v266 = vmul.f32 %v265, %v263
        %v267 = vadd.f32 %v264, %v266
        %v268 = vsub.f32 0.0, %v267
        %v269 = vmul.f32 %v249, %v240
        %v270 = vadd.f32 %v249, %v240
        %v271 = vmul.f32 %v269, 2.0
        %v272 = vsub.f32 %v270, %v271
        %v273 = vmul.f32 %v272, %v272
        %v274 = vmul.f32 %v273, %v268
        %v275 = vld [vmem:[%s228] sm:$0xff]
        %v276 = vadd.f32 %v269, 0.0
        %v277 = vadd.f32 %v275, %v276
        %278 = vst [vmem:[%s228] sm:$0xff] %v277
        %s279 = scalar_lea.vmem %s228, 8 [#allocation7]
        %v280 = vld [vmem:[%s279] sm:$0xff]
        %v281 = vadd.f32 %v249, 0.0
        %v282 = vadd.f32 %v280, %v281
        %283 = vst [vmem:[%s279] sm:$0xff] %v282
        %s284 = scalar_lea.vmem %s228, 16 [#allocation7]
        %v285 = vld [vmem:[%s284] sm:$0xff]
        %v286 = vadd.f32 %v240, 0.0
        %v287 = vadd.f32 %v285, %v286
        %288 = vst [vmem:[%s284] sm:$0xff] %v287
        %s289 = scalar_lea.vmem %s228, 24 [#allocation7]
        %v290 = vld [vmem:[%s289] sm:$0xff]
        %v291 = vadd.f32 %v274, 0.0
        %v292 = vadd.f32 %v290, %v291
        %293 = vst [vmem:[%s289] sm:$0xff] %v292
        %s294 = sand.u32 %s111, 1
        %s295 = scalar_lea.sflag [#allocation4], %s294
        %s296 = sand.u32 %s111, 1
        %s297 = smul.addr %s296, 32
        %s298 = scalar_lea.vmem [#allocation7], %s297
        // Predicated region
        $region41: #{tpu_custom_call.1} parent=27 // pred_check
          %p299 = pneg %p121
        $region42: #{tpu_custom_call.1} parent=27 // pred_check_branch
          %301 = sbr.rel (%p299) target = $region44
        $region43: #{tpu_custom_call.1} parent=27 // pred_region
          %s303 = ssub.s32 512, 512
          %304 = vsyncadd %s295, %s303
          %s305 = smul.addr %s28, 4
          %s306 = smul.addr %s27, 4
          %s307 = sadd.s32 %s305, %s306
          %s308 = smul.addr %s307, 128
          %s309 = scalar_lea.hbm %s2, %s308
          %s310 = sshll.u32 %s298, 4
          %s311 = int_to_ptr.vmem [resolvable:$true] %s310
          %316 = dma.vmem_to_hbm [thread:$0]  %s311, 512, %s309, %s295, 128, 128, 8
        $region44: #{tpu_custom_call.1} parent=27 // pred_fallthru
          _
      $region28: #{tpu_custom_call.1} parent=5 // pred_fallthru
        _
      %p317 = scmp.le.s32.totalorder 2, %s17
      // Predicated region
      $region45: #{tpu_custom_call.1} parent=5 // pred_check
        %p318 = pneg %p317
      $region46: #{tpu_custom_call.1} parent=5 // pred_check_branch
        %320 = sbr.rel (%p318) target = $region48
      $region47: #{tpu_custom_call.1} parent=5 // pred_region
        %s321 = ssub.s32 %s17, 2
        // Predicated region
        $region49: #{tpu_custom_call.1} parent=47 // pred_check
          %p322 = pneg %p127
        $region50: #{tpu_custom_call.1} parent=47 // pred_check_branch
          %324 = sbr.rel (%p322) target = $region52
        $region51: #{tpu_custom_call.1} parent=47 // pred_region
          %s325 = sand.u32 %s112, 1
          %s326 = scalar_lea.sflag [#allocation4], %s325
          %s327 = sand.u32 %s112, 1
          %s328 = smul.addr %s327, 32
          %s329 = scalar_lea.vmem [#allocation7], %s328
          %330 = dma.done %s326, 512
        $region52: #{tpu_custom_call.1} parent=47 // pred_fallthru
          _
      $region48: #{tpu_custom_call.1} parent=5 // pred_fallthru
        _
    $region6: #{tpu_custom_call.1} parent=1 // loop_footer
      %s21 = sadd.s32 1, %s17
    $region7: #{tpu_custom_call.1} parent=1 // loop_footer_branch
      %16 = sbr.rel target = $region3
    $region8: #{tpu_custom_call.1} parent=1 // loop_exit
      _
    %331 = vsyncpa [#allocation3], 1
    %s332 = scalar_lea.sflag [#allocation3], 1
    %333 = vsyncpa %s332, 1
    %334 = vsyncpa [#allocation6], 1
    %s335 = scalar_lea.sflag [#allocation6], 1
    %336 = vsyncpa %s335, 1
    %337 = vsyncpa [#allocation4], 1
    %s338 = scalar_lea.sflag [#allocation4], 1
    %339 = vsyncpa %s338, 1

</llo_original>
